<compile_context>
chip_gen: v7x
topology: tpu7x:2x2x1
jax: 0.10.0
libtpu: 0.0.40
codegen_flags: <defaults>
</compile_context>

<pallas_src>
import functools

import jax
import jax.numpy as jnp
from jax import lax
from jax.experimental import pallas as pl
from jax.experimental.pallas import tpu as pltpu


_MAX_GROUP = 32  # cap on images per grid step (bounds the static unroll)


# ----------------------------------------------------------------------------- kernel
def _haar_kernel(a_ref, x_ref, ll_ref, det_ref, *, nt):
    """a_ref: (4, L_in, L_out) band matrices [LL, LH, HL, HH] (constant, VMEM-resident).
    x_ref:   (Nt, M, L_in)      packed input rows for Nt images (M = Ct * H_p).
    ll_ref:  (Nt, M, L_out)     packed LL rows.
    det_ref: (Nt, 3, M, L_out)  packed LH/HL/HH rows.
    """
    a_ll = a_ref[0]
    a_lh = a_ref[1]
    a_hl = a_ref[2]
    a_hh = a_ref[3]
    for i in range(nt):  # static unroll over images in this step
        xi = x_ref[i].astype(jnp.float32)                       # (M, L_in)
        ll = jnp.dot(xi, a_ll, preferred_element_type=jnp.float32)
        lh = jnp.dot(xi, a_lh, preferred_element_type=jnp.float32)
        hl = jnp.dot(xi, a_hl, preferred_element_type=jnp.float32)
        hh = jnp.dot(xi, a_hh, preferred_element_type=jnp.float32)
        ll_ref[i] = ll.astype(ll_ref.dtype)
        det_ref[i, 0] = lh.astype(det_ref.dtype)
        det_ref[i, 1] = hl.astype(det_ref.dtype)
        det_ref[i, 2] = hh.astype(det_ref.dtype)


# ------------------------------------------------------------------------- constants
def _build_combine_matrices(W, r):
    """Four (r*W, r*W//4) f32 matrices mapping a packed input row (r original image
    rows of width W) to a packed output row (r//2 output rows of width W//2) for the
    LL / LH / HL / HH bands.  Entries are exactly 0 or +-0.5."""
    Wh = W // 2
    L_in, L_out = r * W, (r * W) // 4
    t = lax.broadcasted_iota(jnp.int32, (L_in, L_out), 0)   # packed input lane
    o = lax.broadcasted_iota(jnp.int32, (L_in, L_out), 1)   # packed output lane
    rr, cc = t // W, t % W            # original row within the packed group / column
    so, oo = o // Wh, o % Wh          # output row within the packed group / column
    hit = ((rr // 2) == so) & ((cc // 2) == oo)
    rsign = jnp.where((rr % 2) == 0, 1.0, -1.0).astype(jnp.float32)
    csign = jnp.where((cc % 2) == 0, 1.0, -1.0).astype(jnp.float32)
    half = jnp.float32(0.5)
    zero = jnp.float32(0.0)
    a_ll = jnp.where(hit, half, zero)
    a_lh = jnp.where(hit, half * rsign, zero)
    a_hl = jnp.where(hit, half * csign, zero)
    a_hh = jnp.where(hit, half * rsign * csign, zero)
    return jnp.stack([a_ll, a_lh, a_hl, a_hh], axis=0)      # (4, L_in, L_out) f32


# --------------------------------------------------------------------------- planning
def _pick_pack_factor(H, W, lane_target=512):
    """Largest power-of-two r >= 2 dividing H with r*W <= lane_target (lane packing)."""
    r = 2
    while H % (2 * r) == 0 and (2 * r) * W <= lane_target:
        r *= 2
    return r


def _padded_elems(m, l):
    """Element count of an (m, l) f32/bf16 tile after (8,128) VMEM padding."""
    return (-(-m // 8) * 8) * (-(-l // 128) * 128)


def _largest_divisor_leq(n, k):
    k = int(max(1, min(n, k)))
    while n % k:
        k -= 1
    return k


def _vmem_capacity_bytes():
    try:
        info = pltpu.get_tpu_info()
        cap = getattr(info, "vmem_capacity_bytes", None)
        if cap:
            return int(cap)
    except Exception:
        pass
    return 64 << 20  # conservative default (v7x per-TensorCore)


def _plan_tiling(N, C, H_p, L_in, L_out, itemsize, budget_bytes):
    """Pick (Nt, Ct): whole images / channels per grid step, padding-aware."""
    def io_bytes(nt, ct):
        m = ct * H_p
        per_img = (_padded_elems(m, L_in) + 4 * _padded_elems(m, L_out)) * itemsize
        return 2 * nt * per_img                      # double-buffered in + out

    if io_bytes(1, C) <= budget_bytes:
        # Group as many whole images as fit (bounded by the static-unroll cap).
        nt = 1
        while nt < min(N, _MAX_GROUP) and io_bytes(nt + 1, C) <= budget_bytes:
            nt += 1
        nt = _largest_divisor_leq(N, nt)
        # Load-balance TensorCores: prefer >= 4 grid steps, but never shrink a step
        # below ~1 MiB of HBM traffic (per-step overhead ~0.35 us).
        min_step_bytes = 1 << 20
        while (N // nt) < 4 and nt > 1:
            cand = _largest_divisor_leq(N, nt - 1)
            if io_bytes(cand, C) < min_step_bytes:
                break
            nt = cand
        return nt, C

    # A single image does not fit: split channels (keep (8,128)-friendly blocks).
    for ct in sorted([d for d in range(1, C + 1) if C % d == 0], reverse=True):
        if io_bytes(1, ct) <= budget_bytes and (ct == C or (ct * H_p) % 8 == 0):
            return 1, ct
    return 1, 1  # very large single-channel plane; accept the oversized block


# ---------------------------------------------------------------------------- wrapper
def haar_forward(x, *, lane_target=512):
    """x: (N, C, H, W), even H and W.  Returns (LL, 0, details) like Haar.forward."""
    N, C, H, W = x.shape
    assert H % 2 == 0 and W % 2 == 0, "single-level Haar with mode='zero' needs even H, W"
    Hh, Wh = H // 2, W // 2

    r = _pick_pack_factor(H, W, lane_target)
    H_p, L_in, L_out = H // r, r * W, (r * W) // 4
    itemsize = jnp.dtype(x.dtype).itemsize

    # Generation-aware VMEM budget (v7x: 64 MiB physical per TC; v5e/v6e: 128 MiB).
    cap = _vmem_capacity_bytes()
    vmem_limit = max(32 << 20, min(int(cap * 3 // 4), 96 << 20))
    a_bytes = 2 * 4 * _padded_elems(L_in, L_out) * 4
    budget = max(1 << 20, vmem_limit // 2 - a_bytes)
    Nt, Ct = _plan_tiling(N, C, H_p, L_in, L_out, itemsize, budget)

    A = _build_combine_matrices(W, r)                         # (4, L_in, L_out) f32
    xp = x.reshape(N, C * H_p, L_in)                          # metadata-only reshape

    kernel = functools.partial(_haar_kernel, nt=Nt)
    grid = (N // Nt, C // Ct)
    ll_p, det_p = pl.pallas_call(
        kernel,
        out_shape=(
            jax.ShapeDtypeStruct((N, C * H_p, L_out), x.dtype),
            jax.ShapeDtypeStruct((N, 3, C * H_p, L_out), x.dtype),
        ),
        grid=grid,
        in_specs=[
            # Band matrices: constant index map -> DMA'd once, VMEM-resident.
            pl.BlockSpec((4, L_in, L_out), lambda i, j: (0, 0, 0)),
            pl.BlockSpec((Nt, Ct * H_p, L_in), lambda i, j: (i, j, 0)),
        ],
        out_specs=[
            pl.BlockSpec((Nt, Ct * H_p, L_out), lambda i, j: (i, j, 0)),
            pl.BlockSpec((Nt, 3, Ct * H_p, L_out), lambda i, j: (i, 0, j, 0)),
        ],
        compiler_params=pltpu.CompilerParams(
            dimension_semantics=("parallel", "parallel"),
            vmem_limit_bytes=int(vmem_limit),
        ),
    )(A, xp)

    # Both reshapes are contiguous row-major regroupings (metadata-only).
    LL = ll_p.reshape(N, C, Hh, Wh)
    details = det_p.reshape(N, 3 * C, Hh, Wh)  # == torch.cat([LH, HL, HH], dim=1)
    r_regu = 0
    return LL, r_regu, details


# -------------------------------------------------------------------------- reference
def _haar_reference(x):
    a = x[:, :, 0::2, 0::2]
    b = x[:, :, 0::2, 1::2]
    c = x[:, :, 1::2, 0::2]
    d = x[:, :, 1::2, 1::2]
    LL = 0.5 * (a + b + c + d)
    LH = 0.5 * (a + b - c - d)
    HL = 0.5 * (a - b + c - d)
    HH = 0.5 * (a - b - c + d)
    return LL, jnp.concatenate([LH, HL, HH], axis=1)


if __name__ == "__main__":
    key = jax.random.PRNGKey(0)
    N, C, H, W = 2, 4, 16, 16
    x = jax.random.normal(key, (N, C, H, W), dtype=jnp.float32)

    LL, r, details = haar_forward(x)
    jax.block_until_ready((LL, details))

    assert LL.shape == (N, C, H // 2, W // 2)
    assert details.shape == (N, 3 * C, H // 2, W // 2)
    assert r == 0

    LL_ref, det_ref = _haar_reference(x)
    assert jnp.allclose(LL, LL_ref, atol=1e-4, rtol=1e-4), \
        float(jnp.max(jnp.abs(LL - LL_ref)))
    assert jnp.allclose(details, det_ref, atol=1e-4, rtol=1e-4), \
        float(jnp.max(jnp.abs(details - det_ref)))

    print("KERNEL_OK")
</pallas_src>

<mosaic_0001>
module attributes {stable_mosaic.version = 11 : i64} {
  func.func @_haar_kernel(%arg0: i32, %arg1: i32, %arg2: memref<4x256x64xf32, #tpu.memory_space<vmem>>, %arg3: memref<2x4x256xf32, #tpu.memory_space<vmem>>, %arg4: memref<2x4x64xf32, #tpu.memory_space<vmem>>, %arg5: memref<2x3x4x64xf32, #tpu.memory_space<vmem>>) attributes {dimension_semantics = [#tpu.dimension_semantics<parallel>, #tpu.dimension_semantics<parallel>], iteration_bounds = array<i64: 1, 1>, scalar_prefetch = 0 : i64, scratch_operands = 0 : i64, tpu.core_type = #tpu.core_type<tc>, window_params = [{pipeline_mode = #tpu.pipeline_mode<synchronous>, transform_indices = @transform_0, window_bounds = array<i64: 4, 256, 64>}, {transform_indices = @transform_1, window_bounds = array<i64: 2, 4, 256>}, {transform_indices = @transform_2, window_bounds = array<i64: 2, 4, 64>}, {transform_indices = @transform_3, window_bounds = array<i64: 2, 3, 4, 64>}]} {
    %c0 = arith.constant 0 : index
    %c0_0 = arith.constant 0 : index
    %c0_1 = arith.constant 0 : index
    %0 = vector.load %arg2[%c0, %c0_0, %c0_1] : memref<4x256x64xf32, #tpu.memory_space<vmem>>, vector<1x256x64xf32>
    %1 = vector.shape_cast %0 : vector<1x256x64xf32> to vector<256x64xf32>
    %c1 = arith.constant 1 : index
    %c0_2 = arith.constant 0 : index
    %c0_3 = arith.constant 0 : index
    %2 = vector.load %arg2[%c1, %c0_2, %c0_3] : memref<4x256x64xf32, #tpu.memory_space<vmem>>, vector<1x256x64xf32>
    %3 = vector.shape_cast %2 : vector<1x256x64xf32> to vector<256x64xf32>
    %c2 = arith.constant 2 : index
    %c0_4 = arith.constant 0 : index
    %c0_5 = arith.constant 0 : index
    %4 = vector.load %arg2[%c2, %c0_4, %c0_5] : memref<4x256x64xf32, #tpu.memory_space<vmem>>, vector<1x256x64xf32>
    %5 = vector.shape_cast %4 : vector<1x256x64xf32> to vector<256x64xf32>
    %c3 = arith.constant 3 : index
    %c0_6 = arith.constant 0 : index
    %c0_7 = arith.constant 0 : index
    %6 = vector.load %arg2[%c3, %c0_6, %c0_7] : memref<4x256x64xf32, #tpu.memory_space<vmem>>, vector<1x256x64xf32>
    %7 = vector.shape_cast %6 : vector<1x256x64xf32> to vector<256x64xf32>
    %c0_8 = arith.constant 0 : index
    %c0_9 = arith.constant 0 : index
    %c0_10 = arith.constant 0 : index
    %8 = vector.load %arg3[%c0_8, %c0_9, %c0_10] : memref<2x4x256xf32, #tpu.memory_space<vmem>>, vector<1x4x256xf32>
    %9 = vector.shape_cast %8 : vector<1x4x256xf32> to vector<4x256xf32>
    %cst = arith.constant dense<0.000000e+00> : vector<4x64xf32>
    %10 = tpu.matmul %9, %1, %cst {dimension_numbers = #tpu.dot_dimension_numbers<[1], [0], [0], [1], [0, 0, 1, 1], [], []>} : vector<4x256xf32>, vector<256x64xf32>, vector<4x64xf32> -> vector<4x64xf32>
    %cst_11 = arith.constant dense<0.000000e+00> : vector<4x64xf32>
    %11 = tpu.matmul %9, %3, %cst_11 {dimension_numbers = #tpu.dot_dimension_numbers<[1], [0], [0], [1], [0, 0, 1, 1], [], []>} : vector<4x256xf32>, vector<256x64xf32>, vector<4x64xf32> -> vector<4x64xf32>
    %cst_12 = arith.constant dense<0.000000e+00> : vector<4x64xf32>
    %12 = tpu.matmul %9, %5, %cst_12 {dimension_numbers = #tpu.dot_dimension_numbers<[1], [0], [0], [1], [0, 0, 1, 1], [], []>} : vector<4x256xf32>, vector<256x64xf32>, vector<4x64xf32> -> vector<4x64xf32>
    %cst_13 = arith.constant dense<0.000000e+00> : vector<4x64xf32>
    %13 = tpu.matmul %9, %7, %cst_13 {dimension_numbers = #tpu.dot_dimension_numbers<[1], [0], [0], [1], [0, 0, 1, 1], [], []>} : vector<4x256xf32>, vector<256x64xf32>, vector<4x64xf32> -> vector<4x64xf32>
    %c0_14 = arith.constant 0 : index
    %c0_15 = arith.constant 0 : index
    %c0_16 = arith.constant 0 : index
    %14 = vector.load %arg4[%c0_14, %c0_15, %c0_16] : memref<2x4x64xf32, #tpu.memory_space<vmem>>, vector<1x4x64xf32>
    %15 = vector.shape_cast %14 : vector<1x4x64xf32> to vector<4x64xf32>
    %16 = vector.shape_cast %10 : vector<4x64xf32> to vector<1x4x64xf32>
    tpu.vector_store %arg4[%c0_14, %c0_15, %c0_16], %16 {strides = array<i32>} : memref<2x4x64xf32, #tpu.memory_space<vmem>>, vector<1x4x64xf32>,
    %c0_17 = arith.constant 0 : index
    %c0_18 = arith.constant 0 : index
    %c0_19 = arith.constant 0 : index
    %c0_20 = arith.constant 0 : index
    %17 = vector.load %arg5[%c0_17, %c0_18, %c0_19, %c0_20] : memref<2x3x4x64xf32, #tpu.memory_space<vmem>>, vector<1x1x4x64xf32>
    %18 = vector.shape_cast %17 : vector<1x1x4x64xf32> to vector<4x64xf32>
    %19 = vector.shape_cast %11 : vector<4x64xf32> to vector<1x1x4x64xf32>
    tpu.vector_store %arg5[%c0_17, %c0_18, %c0_19, %c0_20], %19 {strides = array<i32>} : memref<2x3x4x64xf32, #tpu.memory_space<vmem>>, vector<1x1x4x64xf32>,
    %c0_21 = arith.constant 0 : index
    %c1_22 = arith.constant 1 : index
    %c0_23 = arith.constant 0 : index
    %c0_24 = arith.constant 0 : index
    %20 = vector.load %arg5[%c0_21, %c1_22, %c0_23, %c0_24] : memref<2x3x4x64xf32, #tpu.memory_space<vmem>>, vector<1x1x4x64xf32>
    %21 = vector.shape_cast %20 : vector<1x1x4x64xf32> to vector<4x64xf32>
    %22 = vector.shape_cast %12 : vector<4x64xf32> to vector<1x1x4x64xf32>
    tpu.vector_store %arg5[%c0_21, %c1_22, %c0_23, %c0_24], %22 {strides = array<i32>} : memref<2x3x4x64xf32, #tpu.memory_space<vmem>>, vector<1x1x4x64xf32>,
    %c0_25 = arith.constant 0 : index
    %c2_26 = arith.constant 2 : index
    %c0_27 = arith.constant 0 : index
    %c0_28 = arith.constant 0 : index
    %23 = vector.load %arg5[%c0_25, %c2_26, %c0_27, %c0_28] : memref<2x3x4x64xf32, #tpu.memory_space<vmem>>, vector<1x1x4x64xf32>
    %24 = vector.shape_cast %23 : vector<1x1x4x64xf32> to vector<4x64xf32>
    %25 = vector.shape_cast %13 : vector<4x64xf32> to vector<1x1x4x64xf32>
    tpu.vector_store %arg5[%c0_25, %c2_26, %c0_27, %c0_28], %25 {strides = array<i32>} : memref<2x3x4x64xf32, #tpu.memory_space<vmem>>, vector<1x1x4x64xf32>,
    %c1_29 = arith.constant 1 : index
    %c0_30 = arith.constant 0 : index
    %c0_31 = arith.constant 0 : index
    %26 = vector.load %arg3[%c1_29, %c0_30, %c0_31] : memref<2x4x256xf32, #tpu.memory_space<vmem>>, vector<1x4x256xf32>
    %27 = vector.shape_cast %26 : vector<1x4x256xf32> to vector<4x256xf32>
    %cst_32 = arith.constant dense<0.000000e+00> : vector<4x64xf32>
    %28 = tpu.matmul %27, %1, %cst_32 {dimension_numbers = #tpu.dot_dimension_numbers<[1], [0], [0], [1], [0, 0, 1, 1], [], []>} : vector<4x256xf32>, vector<256x64xf32>, vector<4x64xf32> -> vector<4x64xf32>
    %cst_33 = arith.constant dense<0.000000e+00> : vector<4x64xf32>
    %29 = tpu.matmul %27, %3, %cst_33 {dimension_numbers = #tpu.dot_dimension_numbers<[1], [0], [0], [1], [0, 0, 1, 1], [], []>} : vector<4x256xf32>, vector<256x64xf32>, vector<4x64xf32> -> vector<4x64xf32>
    %cst_34 = arith.constant dense<0.000000e+00> : vector<4x64xf32>
    %30 = tpu.matmul %27, %5, %cst_34 {dimension_numbers = #tpu.dot_dimension_numbers<[1], [0], [0], [1], [0, 0, 1, 1], [], []>} : vector<4x256xf32>, vector<256x64xf32>, vector<4x64xf32> -> vector<4x64xf32>
    %cst_35 = arith.constant dense<0.000000e+00> : vector<4x64xf32>
    %31 = tpu.matmul %27, %7, %cst_35 {dimension_numbers = #tpu.dot_dimension_numbers<[1], [0], [0], [1], [0, 0, 1, 1], [], []>} : vector<4x256xf32>, vector<256x64xf32>, vector<4x64xf32> -> vector<4x64xf32>
    %c1_36 = arith.constant 1 : index
    %c0_37 = arith.constant 0 : index
    %c0_38 = arith.constant 0 : index
    %32 = vector.load %arg4[%c1_36, %c0_37, %c0_38] : memref<2x4x64xf32, #tpu.memory_space<vmem>>, vector<1x4x64xf32>
    %33 = vector.shape_cast %32 : vector<1x4x64xf32> to vector<4x64xf32>
    %34 = vector.shape_cast %28 : vector<4x64xf32> to vector<1x4x64xf32>
    tpu.vector_store %arg4[%c1_36, %c0_37, %c0_38], %34 {strides = array<i32>} : memref<2x4x64xf32, #tpu.memory_space<vmem>>, vector<1x4x64xf32>,
    %c1_39 = arith.constant 1 : index
    %c0_40 = arith.constant 0 : index
    %c0_41 = arith.constant 0 : index
    %c0_42 = arith.constant 0 : index
    %35 = vector.load %arg5[%c1_39, %c0_40, %c0_41, %c0_42] : memref<2x3x4x64xf32, #tpu.memory_space<vmem>>, vector<1x1x4x64xf32>
    %36 = vector.shape_cast %35 : vector<1x1x4x64xf32> to vector<4x64xf32>
    %37 = vector.shape_cast %29 : vector<4x64xf32> to vector<1x1x4x64xf32>
    tpu.vector_store %arg5[%c1_39, %c0_40, %c0_41, %c0_42], %37 {strides = array<i32>} : memref<2x3x4x64xf32, #tpu.memory_space<vmem>>, vector<1x1x4x64xf32>,
    %c1_43 = arith.constant 1 : index
    %c1_44 = arith.constant 1 : index
    %c0_45 = arith.constant 0 : index
    %c0_46 = arith.constant 0 : index
    %38 = vector.load %arg5[%c1_43, %c1_44, %c0_45, %c0_46] : memref<2x3x4x64xf32, #tpu.memory_space<vmem>>, vector<1x1x4x64xf32>
    %39 = vector.shape_cast %38 : vector<1x1x4x64xf32> to vector<4x64xf32>
    %40 = vector.shape_cast %30 : vector<4x64xf32> to vector<1x1x4x64xf32>
    tpu.vector_store %arg5[%c1_43, %c1_44, %c0_45, %c0_46], %40 {strides = array<i32>} : memref<2x3x4x64xf32, #tpu.memory_space<vmem>>, vector<1x1x4x64xf32>,
    %c1_47 = arith.constant 1 : index
    %c2_48 = arith.constant 2 : index
    %c0_49 = arith.constant 0 : index
    %c0_50 = arith.constant 0 : index
    %41 = vector.load %arg5[%c1_47, %c2_48, %c0_49, %c0_50] : memref<2x3x4x64xf32, #tpu.memory_space<vmem>>, vector<1x1x4x64xf32>
    %42 = vector.shape_cast %41 : vector<1x1x4x64xf32> to vector<4x64xf32>
    %43 = vector.shape_cast %31 : vector<4x64xf32> to vector<1x1x4x64xf32>
    tpu.vector_store %arg5[%c1_47, %c2_48, %c0_49, %c0_50], %43 {strides = array<i32>} : memref<2x3x4x64xf32, #tpu.memory_space<vmem>>, vector<1x1x4x64xf32>,
    return
  }
  func.func @transform_0(%arg0: i32, %arg1: i32) -> (i32, i32, i32) {
    %c0_i32 = arith.constant 0 : i32
    %c0_i32_0 = arith.constant 0 : i32
    %c0_i32_1 = arith.constant 0 : i32
    %c0_i32_2 = arith.constant 0 : i32
    return %c0_i32, %c0_i32_0, %c0_i32_1 : i32, i32, i32
  }
  func.func @transform_1(%arg0: i32, %arg1: i32) -> (i32, i32, i32) {
    %c0_i32 = arith.constant 0 : i32
    %c0_i32_0 = arith.constant 0 : i32
    return %arg0, %arg1, %c0_i32 : i32, i32, i32
  }
  func.func @transform_2(%arg0: i32, %arg1: i32) -> (i32, i32, i32) {
    %c0_i32 = arith.constant 0 : i32
    %c0_i32_0 = arith.constant 0 : i32
    return %arg0, %arg1, %c0_i32 : i32, i32, i32
  }
  func.func @transform_3(%arg0: i32, %arg1: i32) -> (i32, i32, i32, i32) {
    %c0_i32 = arith.constant 0 : i32
    %c0_i32_0 = arith.constant 0 : i32
    %c0_i32_1 = arith.constant 0 : i32
    return %arg0, %c0_i32, %arg1, %c0_i32_0 : i32, i32, i32, i32
  }
}

</mosaic_0001>

<llo_original>
// kernel: tpu_custom_call.1
$region0: #{tpu_custom_call.1}
  #allocation0 [shape = 'u32[]', space=smem, size = 0x4, offset = 0x4, fixed_abs, tag = 'smem constant byte address 0x4 - core index']
  #allocation1 [shape = 'u32[144,128]{1,0:T(1,128)}', space=vmem, size = 0x12000, scoped, tag = 'internal scratch']
  %s0 = inlined_call_operand.vmem [shape: f32[4,256,64], index: 0, kind: input, shape index: {}]
  %s1 = inlined_call_operand.vmem [shape: f32[2,4,256], index: 1, kind: input, shape index: {}]
  %s2 = inlined_call_operand.hbm [shape: f32[2,4,64], index: 2, kind: output, shape index: {0}]
  %s3 = inlined_call_operand.hbm [shape: f32[2,3,4,64], index: 3, kind: output, shape index: {1}]
  %4 = xla_tuple %s2, %s3
  %s5 = sld [smem:[#allocation0]]
  $region26: #{tpu_custom_call.1} parent=0
    _
  %s7 = ssub.s32 1, %s5
  %s8 = scalar_select 0, %s7, %s5
  $region1: #{tpu_custom_call.1} parent=0
    #allocation2 [shape = 'u8[4096]{0}', space=vmem, size = 0x1000, scoped, tag = 'output window, operand 0, single buffered']
    #allocation3 [shape = 's32[1]{0}', space=sflag, size = 0x4, scoped, tag = 'scoped memory for tpu_custom_call.1']
    #allocation4 [shape = 'u8[12288]{0}', space=vmem, size = 0x3000, scoped, tag = 'output window, operand 1, single buffered']
    #allocation5 [shape = 's32[1]{0}', space=sflag, size = 0x4, scoped, tag = 'scoped memory for tpu_custom_call.1']
    %9 = vsyncpa [#allocation3], 0
    %10 = vsyncpa [#allocation5], 0
    // Predicated region
    $region2: #{tpu_custom_call.1} parent=1 // pred_check
      _
    $region3: #{tpu_custom_call.1} parent=1 // pred_check_branch
      %12 = sbr.rel (0) target = $region5
    $region4: #{tpu_custom_call.1} parent=1 // pred_region
      _
    $region5: #{tpu_custom_call.1} parent=1 // pred_fallthru
      _
    // Predicated region
    $region6: #{tpu_custom_call.1} parent=1 // pred_check
      _
    $region7: #{tpu_custom_call.1} parent=1 // pred_check_branch
      %14 = sbr.rel (0) target = $region9
    $region8: #{tpu_custom_call.1} parent=1 // pred_region
      _
    $region9: #{tpu_custom_call.1} parent=1 // pred_fallthru
      _
    %v15 = vld [vmem:[%s0] sm:$0xff]
    %v16 = vld [vmem:[%s0 + $0x8] sm:$0xff]
    %v17 = vld [vmem:[%s0 + $0x10] sm:$0xff]
    %v18 = vld [vmem:[%s0 + $0x18] sm:$0xff]
    %v19 = vld [vmem:[%s0 + $0x20] sm:$0xff]
    %v20 = vld [vmem:[%s0 + $0x28] sm:$0xff]
    %v21 = vld [vmem:[%s0 + $0x30] sm:$0xff]
    %v22 = vld [vmem:[%s0 + $0x38] sm:$0xff]
    %v23 = vld [vmem:[%s0 + $0x40] sm:$0xff]
    %v24 = vld [vmem:[%s0 + $0x48] sm:$0xff]
    %v25 = vld [vmem:[%s0 + $0x50] sm:$0xff]
    %v26 = vld [vmem:[%s0 + $0x58] sm:$0xff]
    %v27 = vld [vmem:[%s0 + $0x60] sm:$0xff]
    %v28 = vld [vmem:[%s0 + $0x68] sm:$0xff]
    %v29 = vld [vmem:[%s0 + $0x70] sm:$0xff]
    %v30 = vld [vmem:[%s0 + $0x78] sm:$0xff]
    %v31 = vld [vmem:[%s0 + $0x80] sm:$0xff]
    %v32 = vld [vmem:[%s0 + $0x88] sm:$0xff]
    %v33 = vld [vmem:[%s0 + $0x90] sm:$0xff]
    %v34 = vld [vmem:[%s0 + $0x98] sm:$0xff]
    %v35 = vld [vmem:[%s0 + $0xa0] sm:$0xff]
    %v36 = vld [vmem:[%s0 + $0xa8] sm:$0xff]
    %v37 = vld [vmem:[%s0 + $0xb0] sm:$0xff]
    %v38 = vld [vmem:[%s0 + $0xb8] sm:$0xff]
    %v39 = vld [vmem:[%s0 + $0xc0] sm:$0xff]
    %v40 = vld [vmem:[%s0 + $0xc8] sm:$0xff]
    %v41 = vld [vmem:[%s0 + $0xd0] sm:$0xff]
    %v42 = vld [vmem:[%s0 + $0xd8] sm:$0xff]
    %v43 = vld [vmem:[%s0 + $0xe0] sm:$0xff]
    %v44 = vld [vmem:[%s0 + $0xe8] sm:$0xff]
    %v45 = vld [vmem:[%s0 + $0xf0] sm:$0xff]
    %v46 = vld [vmem:[%s0 + $0xf8] sm:$0xff]
    %s47 = scalar_lea.vmem %s0, 256
    %v48 = vld [vmem:[%s47] sm:$0xff]
    %v49 = vld [vmem:[%s47 + $0x8] sm:$0xff]
    %v50 = vld [vmem:[%s47 + $0x10] sm:$0xff]
    %v51 = vld [vmem:[%s47 + $0x18] sm:$0xff]
    %v52 = vld [vmem:[%s47 + $0x20] sm:$0xff]
    %v53 = vld [vmem:[%s47 + $0x28] sm:$0xff]
    %v54 = vld [vmem:[%s47 + $0x30] sm:$0xff]
    %v55 = vld [vmem:[%s47 + $0x38] sm:$0xff]
    %v56 = vld [vmem:[%s47 + $0x40] sm:$0xff]
    %v57 = vld [vmem:[%s47 + $0x48] sm:$0xff]
    %v58 = vld [vmem:[%s47 + $0x50] sm:$0xff]
    %v59 = vld [vmem:[%s47 + $0x58] sm:$0xff]
    %v60 = vld [vmem:[%s47 + $0x60] sm:$0xff]
    %v61 = vld [vmem:[%s47 + $0x68] sm:$0xff]
    %v62 = vld [vmem:[%s47 + $0x70] sm:$0xff]
    %v63 = vld [vmem:[%s47 + $0x78] sm:$0xff]
    %v64 = vld [vmem:[%s47 + $0x80] sm:$0xff]
    %v65 = vld [vmem:[%s47 + $0x88] sm:$0xff]
    %v66 = vld [vmem:[%s47 + $0x90] sm:$0xff]
    %v67 = vld [vmem:[%s47 + $0x98] sm:$0xff]
    %v68 = vld [vmem:[%s47 + $0xa0] sm:$0xff]
    %v69 = vld [vmem:[%s47 + $0xa8] sm:$0xff]
    %v70 = vld [vmem:[%s47 + $0xb0] sm:$0xff]
    %v71 = vld [vmem:[%s47 + $0xb8] sm:$0xff]
    %v72 = vld [vmem:[%s47 + $0xc0] sm:$0xff]
    %v73 = vld [vmem:[%s47 + $0xc8] sm:$0xff]
    %v74 = vld [vmem:[%s47 + $0xd0] sm:$0xff]
    %v75 = vld [vmem:[%s47 + $0xd8] sm:$0xff]
    %v76 = vld [vmem:[%s47 + $0xe0] sm:$0xff]
    %v77 = vld [vmem:[%s47 + $0xe8] sm:$0xff]
    %v78 = vld [vmem:[%s47 + $0xf0] sm:$0xff]
    %v79 = vld [vmem:[%s47 + $0xf8] sm:$0xff]
    %s80 = scalar_lea.vmem %s0, 512
    %v81 = vld [vmem:[%s80] sm:$0xff]
    %v82 = vld [vmem:[%s80 + $0x8] sm:$0xff]
    %v83 = vld [vmem:[%s80 + $0x10] sm:$0xff]
    %v84 = vld [vmem:[%s80 + $0x18] sm:$0xff]
    %v85 = vld [vmem:[%s80 + $0x20] sm:$0xff]
    %v86 = vld [vmem:[%s80 + $0x28] sm:$0xff]
    %v87 = vld [vmem:[%s80 + $0x30] sm:$0xff]
    %v88 = vld [vmem:[%s80 + $0x38] sm:$0xff]
    %v89 = vld [vmem:[%s80 + $0x40] sm:$0xff]
    %v90 = vld [vmem:[%s80 + $0x48] sm:$0xff]
    %v91 = vld [vmem:[%s80 + $0x50] sm:$0xff]
    %v92 = vld [vmem:[%s80 + $0x58] sm:$0xff]
    %v93 = vld [vmem:[%s80 + $0x60] sm:$0xff]
    %v94 = vld [vmem:[%s80 + $0x68] sm:$0xff]
    %v95 = vld [vmem:[%s80 + $0x70] sm:$0xff]
    %v96 = vld [vmem:[%s80 + $0x78] sm:$0xff]
    %v97 = vld [vmem:[%s80 + $0x80] sm:$0xff]
    %v98 = vld [vmem:[%s80 + $0x88] sm:$0xff]
    %v99 = vld [vmem:[%s80 + $0x90] sm:$0xff]
    %v100 = vld [vmem:[%s80 + $0x98] sm:$0xff]
    %v101 = vld [vmem:[%s80 + $0xa0] sm:$0xff]
    %v102 = vld [vmem:[%s80 + $0xa8] sm:$0xff]
    %v103 = vld [vmem:[%s80 + $0xb0] sm:$0xff]
    %v104 = vld [vmem:[%s80 + $0xb8] sm:$0xff]
    %v105 = vld [vmem:[%s80 + $0xc0] sm:$0xff]
    %v106 = vld [vmem:[%s80 + $0xc8] sm:$0xff]
    %v107 = vld [vmem:[%s80 + $0xd0] sm:$0xff]
    %v108 = vld [vmem:[%s80 + $0xd8] sm:$0xff]
    %v109 = vld [vmem:[%s80 + $0xe0] sm:$0xff]
    %v110 = vld [vmem:[%s80 + $0xe8] sm:$0xff]
    %v111 = vld [vmem:[%s80 + $0xf0] sm:$0xff]
    %v112 = vld [vmem:[%s80 + $0xf8] sm:$0xff]
    %s113 = scalar_lea.vmem %s0, 768
    %v114 = vld [vmem:[%s113] sm:$0xff]
    %v115 = vld [vmem:[%s113 + $0x8] sm:$0xff]
    %v116 = vld [vmem:[%s113 + $0x10] sm:$0xff]
    %v117 = vld [vmem:[%s113 + $0x18] sm:$0xff]
    %v118 = vld [vmem:[%s113 + $0x20] sm:$0xff]
    %v119 = vld [vmem:[%s113 + $0x28] sm:$0xff]
    %v120 = vld [vmem:[%s113 + $0x30] sm:$0xff]
    %v121 = vld [vmem:[%s113 + $0x38] sm:$0xff]
    %v122 = vld [vmem:[%s113 + $0x40] sm:$0xff]
    %v123 = vld [vmem:[%s113 + $0x48] sm:$0xff]
    %v124 = vld [vmem:[%s113 + $0x50] sm:$0xff]
    %v125 = vld [vmem:[%s113 + $0x58] sm:$0xff]
    %v126 = vld [vmem:[%s113 + $0x60] sm:$0xff]
    %v127 = vld [vmem:[%s113 + $0x68] sm:$0xff]
    %v128 = vld [vmem:[%s113 + $0x70] sm:$0xff]
    %v129 = vld [vmem:[%s113 + $0x78] sm:$0xff]
    %v130 = vld [vmem:[%s113 + $0x80] sm:$0xff]
    %v131 = vld [vmem:[%s113 + $0x88] sm:$0xff]
    %v132 = vld [vmem:[%s113 + $0x90] sm:$0xff]
    %v133 = vld [vmem:[%s113 + $0x98] sm:$0xff]
    %v134 = vld [vmem:[%s113 + $0xa0] sm:$0xff]
    %v135 = vld [vmem:[%s113 + $0xa8] sm:$0xff]
    %v136 = vld [vmem:[%s113 + $0xb0] sm:$0xff]
    %v137 = vld [vmem:[%s113 + $0xb8] sm:$0xff]
    %v138 = vld [vmem:[%s113 + $0xc0] sm:$0xff]
    %v139 = vld [vmem:[%s113 + $0xc8] sm:$0xff]
    %v140 = vld [vmem:[%s113 + $0xd0] sm:$0xff]
    %v141 = vld [vmem:[%s113 + $0xd8] sm:$0xff]
    %v142 = vld [vmem:[%s113 + $0xe0] sm:$0xff]
    %v143 = vld [vmem:[%s113 + $0xe8] sm:$0xff]
    %v144 = vld [vmem:[%s113 + $0xf0] sm:$0xff]
    %v145 = vld [vmem:[%s113 + $0xf8] sm:$0xff]
    %v146 = vld [vmem:[%s1] sm:$0xff]
    %v148 = vcombine.high %v146, %v146
    %150 = vmatprep.subr.mxu0 0.0
    %151 = vmatpush1.msra.mxu0 %v15
    %152 = vmatprep.subr.mxu0 0.0
    %153 = vmatpush1.msra.mxu0 %v16
    %154 = vmatprep.subr.mxu0 0.0
    %155 = vmatpush1.msra.mxu0 %v17
    %156 = vmatprep.subr.mxu0 0.0
    %157 = vmatpush1.msra.mxu0 %v18
    %158 = vmatprep.subr.mxu0 0.0
    %159 = vmatpush1.msra.mxu0 %v19
    %160 = vmatprep.subr.mxu0 0.0
    %161 = vmatpush1.msra.mxu0 %v20
    %162 = vmatprep.subr.mxu0 0.0
    %163 = vmatpush1.msra.mxu0 %v21
    %164 = vmatprep.subr.mxu0 0.0
    %165 = vmatpush1.msra.mxu0 %v22
    %166 = vmatprep.subr.mxu0 0.0
    %167 = vmatpush1.msra.mxu0 %v23
    %168 = vmatprep.subr.mxu0 0.0
    %169 = vmatpush1.msra.mxu0 %v24
    %170 = vmatprep.subr.mxu0 0.0
    %171 = vmatpush1.msra.mxu0 %v25
    %172 = vmatprep.subr.mxu0 0.0
    %173 = vmatpush1.msra.mxu0 %v26
    %174 = vmatprep.subr.mxu0 0.0
    %175 = vmatpush1.msra.mxu0 %v27
    %176 = vmatprep.subr.mxu0 0.0
    %177 = vmatpush1.msra.mxu0 %v28
    %178 = vmatprep.subr.mxu0 0.0
    %179 = vmatpush1.msra.mxu0 %v29
    %180 = vmatprep.subr.mxu0 0.0
    %181 = vmatpush1.msra.mxu0 %v30
    %182 = vmatprep.subr.mxu0 0.0
    %183 = vmatpush1.msra.mxu0 %v31
    %184 = vmatprep.subr.mxu0 0.0
    %185 = vmatpush1.msra.mxu0 %v32
    %186 = vmatprep.subr.mxu0 0.0
    %187 = vmatpush1.msra.mxu0 %v33
    %188 = vmatprep.subr.mxu0 0.0
    %189 = vmatpush1.msra.mxu0 %v34
    %190 = vmatprep.subr.mxu0 0.0
    %191 = vmatpush1.msra.mxu0 %v35
    %192 = vmatprep.subr.mxu0 0.0
    %193 = vmatpush1.msra.mxu0 %v36
    %194 = vmatprep.subr.mxu0 0.0
    %195 = vmatpush1.msra.mxu0 %v37
    %196 = vmatprep.subr.mxu0 0.0
    %197 = vmatpush1.msra.mxu0 %v38
    %198 = vmatprep.subr.mxu0 0.0
    %199 = vmatpush1.msra.mxu0 %v39
    %200 = vmatprep.subr.mxu0 0.0
    %201 = vmatpush1.msra.mxu0 %v40
    %202 = vmatprep.subr.mxu0 0.0
    %203 = vmatpush1.msra.mxu0 %v41
    %204 = vmatprep.subr.mxu0 0.0
    %205 = vmatpush1.msra.mxu0 %v42
    %206 = vmatprep.subr.mxu0 0.0
    %207 = vmatpush1.msra.mxu0 %v43
    %208 = vmatprep.subr.mxu0 0.0
    %209 = vmatpush1.msra.mxu0 %v44
    %210 = vmatprep.subr.mxu0 0.0
    %211 = vmatpush1.msra.mxu0 %v45
    %212 = vmatprep.subr.mxu0 0.0
    %213 = vmatpush1.msra.mxu0 %v46
    %214 = vmatprep.mubr.f32.mxu0 %v148
    %215 = vmatmul.mubr.f32.gmra.mrb[0].mxu0 %v146
    %v216 = vpop.f32.mrb[0].mxu0
    %v217 = vadd.f32 0.0, %v216
    %v218 = vpop.f32.mrb[0].mxu0
    %219 = vdwg.mxu0
    %220 = vmatprep.subr.mxu0 0.0
    %221 = vmatpush1.msra.mxu0 %v48
    %222 = vmatprep.subr.mxu0 0.0
    %223 = vmatpush1.msra.mxu0 %v49
    %224 = vmatprep.subr.mxu0 0.0
    %225 = vmatpush1.msra.mxu0 %v50
    %226 = vmatprep.subr.mxu0 0.0
    %227 = vmatpush1.msra.mxu0 %v51
    %228 = vmatprep.subr.mxu0 0.0
    %229 = vmatpush1.msra.mxu0 %v52
    %230 = vmatprep.subr.mxu0 0.0
    %231 = vmatpush1.msra.mxu0 %v53
    %232 = vmatprep.subr.mxu0 0.0
    %233 = vmatpush1.msra.mxu0 %v54
    %234 = vmatprep.subr.mxu0 0.0
    %235 = vmatpush1.msra.mxu0 %v55
    %236 = vmatprep.subr.mxu0 0.0
    %237 = vmatpush1.msra.mxu0 %v56
    %238 = vmatprep.subr.mxu0 0.0
    %239 = vmatpush1.msra.mxu0 %v57
    %240 = vmatprep.subr.mxu0 0.0
    %241 = vmatpush1.msra.mxu0 %v58
    %242 = vmatprep.subr.mxu0 0.0
    %243 = vmatpush1.msra.mxu0 %v59
    %244 = vmatprep.subr.mxu0 0.0
    %245 = vmatpush1.msra.mxu0 %v60
    %246 = vmatprep.subr.mxu0 0.0
    %247 = vmatpush1.msra.mxu0 %v61
    %248 = vmatprep.subr.mxu0 0.0
    %249 = vmatpush1.msra.mxu0 %v62
    %250 = vmatprep.subr.mxu0 0.0
    %251 = vmatpush1.msra.mxu0 %v63
    %252 = vmatprep.subr.mxu0 0.0
    %253 = vmatpush1.msra.mxu0 %v64
    %254 = vmatprep.subr.mxu0 0.0
    %255 = vmatpush1.msra.mxu0 %v65
    %256 = vmatprep.subr.mxu0 0.0
    %257 = vmatpush1.msra.mxu0 %v66
    %258 = vmatprep.subr.mxu0 0.0
    %259 = vmatpush1.msra.mxu0 %v67
    %260 = vmatprep.subr.mxu0 0.0
    %261 = vmatpush1.msra.mxu0 %v68
    %262 = vmatprep.subr.mxu0 0.0
    %263 = vmatpush1.msra.mxu0 %v69
    %264 = vmatprep.subr.mxu0 0.0
    %265 = vmatpush1.msra.mxu0 %v70
    %266 = vmatprep.subr.mxu0 0.0
    %267 = vmatpush1.msra.mxu0 %v71
    %268 = vmatprep.subr.mxu0 0.0
    %269 = vmatpush1.msra.mxu0 %v72
    %270 = vmatprep.subr.mxu0 0.0
    %271 = vmatpush1.msra.mxu0 %v73
    %272 = vmatprep.subr.mxu0 0.0
    %273 = vmatpush1.msra.mxu0 %v74
    %274 = vmatprep.subr.mxu0 0.0
    %275 = vmatpush1.msra.mxu0 %v75
    %276 = vmatprep.subr.mxu0 0.0
    %277 = vmatpush1.msra.mxu0 %v76
    %278 = vmatprep.subr.mxu0 0.0
    %279 = vmatpush1.msra.mxu0 %v77
    %280 = vmatprep.subr.mxu0 0.0
    %281 = vmatpush1.msra.mxu0 %v78
    %282 = vmatprep.subr.mxu0 0.0
    %283 = vmatpush1.msra.mxu0 %v79
    %284 = vmatprep.mubr.f32.mxu0 %v148
    %285 = vmatmul.mubr.f32.gmra.mrb[0].mxu0 %v146
    %v286 = vpop.f32.mrb[0].mxu0
    %v287 = vadd.f32 0.0, %v286
    %v288 = vpop.f32.mrb[0].mxu0
    %289 = vdwg.mxu0
    %290 = vmatprep.subr.mxu0 0.0
    %291 = vmatpush1.msra.mxu0 %v81
    %292 = vmatprep.subr.mxu0 0.0
    %293 = vmatpush1.msra.mxu0 %v82
    %294 = vmatprep.subr.mxu0 0.0
    %295 = vmatpush1.msra.mxu0 %v83
    %296 = vmatprep.subr.mxu0 0.0
    %297 = vmatpush1.msra.mxu0 %v84
    %298 = vmatprep.subr.mxu0 0.0
    %299 = vmatpush1.msra.mxu0 %v85
    %300 = vmatprep.subr.mxu0 0.0
    %301 = vmatpush1.msra.mxu0 %v86
    %302 = vmatprep.subr.mxu0 0.0
    %303 = vmatpush1.msra.mxu0 %v87
    %304 = vmatprep.subr.mxu0 0.0
    %305 = vmatpush1.msra.mxu0 %v88
    %306 = vmatprep.subr.mxu0 0.0
    %307 = vmatpush1.msra.mxu0 %v89
    %308 = vmatprep.subr.mxu0 0.0
    %309 = vmatpush1.msra.mxu0 %v90
    %310 = vmatprep.subr.mxu0 0.0
    %311 = vmatpush1.msra.mxu0 %v91
    %312 = vmatprep.subr.mxu0 0.0
    %313 = vmatpush1.msra.mxu0 %v92
    %314 = vmatprep.subr.mxu0 0.0
    %315 = vmatpush1.msra.mxu0 %v93
    %316 = vmatprep.subr.mxu0 0.0
    %317 = vmatpush1.msra.mxu0 %v94
    %318 = vmatprep.subr.mxu0 0.0
    %319 = vmatpush1.msra.mxu0 %v95
    %320 = vmatprep.subr.mxu0 0.0
    %321 = vmatpush1.msra.mxu0 %v96
    %322 = vmatprep.subr.mxu0 0.0
    %323 = vmatpush1.msra.mxu0 %v97
    %324 = vmatprep.subr.mxu0 0.0
    %325 = vmatpush1.msra.mxu0 %v98
    %326 = vmatprep.subr.mxu0 0.0
    %327 = vmatpush1.msra.mxu0 %v99
    %328 = vmatprep.subr.mxu0 0.0
    %329 = vmatpush1.msra.mxu0 %v100
    %330 = vmatprep.subr.mxu0 0.0
    %331 = vmatpush1.msra.mxu0 %v101
    %332 = vmatprep.subr.mxu0 0.0
    %333 = vmatpush1.msra.mxu0 %v102
    %334 = vmatprep.subr.mxu0 0.0
    %335 = vmatpush1.msra.mxu0 %v103
    %336 = vmatprep.subr.mxu0 0.0
    %337 = vmatpush1.msra.mxu0 %v104
    %338 = vmatprep.subr.mxu0 0.0
    %339 = vmatpush1.msra.mxu0 %v105
    %340 = vmatprep.subr.mxu0 0.0
    %341 = vmatpush1.msra.mxu0 %v106
    %342 = vmatprep.subr.mxu0 0.0
    %343 = vmatpush1.msra.mxu0 %v107
    %344 = vmatprep.subr.mxu0 0.0
    %345 = vmatpush1.msra.mxu0 %v108
    %346 = vmatprep.subr.mxu0 0.0
    %347 = vmatpush1.msra.mxu0 %v109
    %348 = vmatprep.subr.mxu0 0.0
    %349 = vmatpush1.msra.mxu0 %v110
    %350 = vmatprep.subr.mxu0 0.0
    %351 = vmatpush1.msra.mxu0 %v111
    %352 = vmatprep.subr.mxu0 0.0
    %353 = vmatpush1.msra.mxu0 %v112
    %354 = vmatprep.mubr.f32.mxu0 %v148
    %355 = vmatmul.mubr.f32.gmra.mrb[0].mxu0 %v146
    %v356 = vpop.f32.mrb[0].mxu0
    %v357 = vadd.f32 0.0, %v356
    %v358 = vpop.f32.mrb[0].mxu0
    %359 = vdwg.mxu0
    %360 = vmatprep.subr.mxu0 0.0
    %361 = vmatpush1.msra.mxu0 %v114
    %362 = vmatprep.subr.mxu0 0.0
    %363 = vmatpush1.msra.mxu0 %v115
    %364 = vmatprep.subr.mxu0 0.0
    %365 = vmatpush1.msra.mxu0 %v116
    %366 = vmatprep.subr.mxu0 0.0
    %367 = vmatpush1.msra.mxu0 %v117
    %368 = vmatprep.subr.mxu0 0.0
    %369 = vmatpush1.msra.mxu0 %v118
    %370 = vmatprep.subr.mxu0 0.0
    %371 = vmatpush1.msra.mxu0 %v119
    %372 = vmatprep.subr.mxu0 0.0
    %373 = vmatpush1.msra.mxu0 %v120
    %374 = vmatprep.subr.mxu0 0.0
    %375 = vmatpush1.msra.mxu0 %v121
    %376 = vmatprep.subr.mxu0 0.0
    %377 = vmatpush1.msra.mxu0 %v122
    %378 = vmatprep.subr.mxu0 0.0
    %379 = vmatpush1.msra.mxu0 %v123
    %380 = vmatprep.subr.mxu0 0.0
    %381 = vmatpush1.msra.mxu0 %v124
    %382 = vmatprep.subr.mxu0 0.0
    %383 = vmatpush1.msra.mxu0 %v125
    %384 = vmatprep.subr.mxu0 0.0
    %385 = vmatpush1.msra.mxu0 %v126
    %386 = vmatprep.subr.mxu0 0.0
    %387 = vmatpush1.msra.mxu0 %v127
    %388 = vmatprep.subr.mxu0 0.0
    %389 = vmatpush1.msra.mxu0 %v128
    %390 = vmatprep.subr.mxu0 0.0
    %391 = vmatpush1.msra.mxu0 %v129
    %392 = vmatprep.subr.mxu0 0.0
    %393 = vmatpush1.msra.mxu0 %v130
    %394 = vmatprep.subr.mxu0 0.0
    %395 = vmatpush1.msra.mxu0 %v131
    %396 = vmatprep.subr.mxu0 0.0
    %397 = vmatpush1.msra.mxu0 %v132
    %398 = vmatprep.subr.mxu0 0.0
    %399 = vmatpush1.msra.mxu0 %v133
    %400 = vmatprep.subr.mxu0 0.0
    %401 = vmatpush1.msra.mxu0 %v134
    %402 = vmatprep.subr.mxu0 0.0
    %403 = vmatpush1.msra.mxu0 %v135
    %404 = vmatprep.subr.mxu0 0.0
    %405 = vmatpush1.msra.mxu0 %v136
    %406 = vmatprep.subr.mxu0 0.0
    %407 = vmatpush1.msra.mxu0 %v137
    %408 = vmatprep.subr.mxu0 0.0
    %409 = vmatpush1.msra.mxu0 %v138
    %410 = vmatprep.subr.mxu0 0.0
    %411 = vmatpush1.msra.mxu0 %v139
    %412 = vmatprep.subr.mxu0 0.0
    %413 = vmatpush1.msra.mxu0 %v140
    %414 = vmatprep.subr.mxu0 0.0
    %415 = vmatpush1.msra.mxu0 %v141
    %416 = vmatprep.subr.mxu0 0.0
    %417 = vmatpush1.msra.mxu0 %v142
    %418 = vmatprep.subr.mxu0 0.0
    %419 = vmatpush1.msra.mxu0 %v143
    %420 = vmatprep.subr.mxu0 0.0
    %421 = vmatpush1.msra.mxu0 %v144
    %422 = vmatprep.subr.mxu0 0.0
    %423 = vmatpush1.msra.mxu0 %v145
    %424 = vmatprep.mubr.f32.mxu0 %v148
    %425 = vmatmul.mubr.f32.gmra.mrb[0].mxu0 %v146
    %v426 = vpop.f32.mrb[0].mxu0
    %v427 = vadd.f32 0.0, %v426
    %v428 = vpop.f32.mrb[0].mxu0
    %429 = vdwg.mxu0
    %vm430 = vcmask 519168
    %431 = vst.msk [vmem:[#allocation2] sm:$0xf] %vm430, %v217
    %432 = vst.msk [vmem:[#allocation4] sm:$0xf] %vm430, %v287
    %s433 = scalar_lea.vmem [#allocation4], 4
    %434 = vst.msk [vmem:[%s433] sm:$0xf] %vm430, %v357
    %s435 = scalar_lea.vmem [#allocation4], 8
    %436 = vst.msk [vmem:[%s435] sm:$0xf] %vm430, %v427
    %s437 = scalar_lea.vmem %s1, 8
    %v438 = vld [vmem:[%s437] sm:$0xff]
    %v440 = vcombine.high %v438, %v438
    %442 = vmatprep.subr.mxu0 0.0
    %443 = vmatpush1.msra.mxu0 %v15
    %444 = vmatprep.subr.mxu0 0.0
    %445 = vmatpush1.msra.mxu0 %v16
    %446 = vmatprep.subr.mxu0 0.0
    %447 = vmatpush1.msra.mxu0 %v17
    %448 = vmatprep.subr.mxu0 0.0
    %449 = vmatpush1.msra.mxu0 %v18
    %450 = vmatprep.subr.mxu0 0.0
    %451 = vmatpush1.msra.mxu0 %v19
    %452 = vmatprep.subr.mxu0 0.0
    %453 = vmatpush1.msra.mxu0 %v20
    %454 = vmatprep.subr.mxu0 0.0
    %455 = vmatpush1.msra.mxu0 %v21
    %456 = vmatprep.subr.mxu0 0.0
    %457 = vmatpush1.msra.mxu0 %v22
    %458 = vmatprep.subr.mxu0 0.0
    %459 = vmatpush1.msra.mxu0 %v23
    %460 = vmatprep.subr.mxu0 0.0
    %461 = vmatpush1.msra.mxu0 %v24
    %462 = vmatprep.subr.mxu0 0.0
    %463 = vmatpush1.msra.mxu0 %v25
    %464 = vmatprep.subr.mxu0 0.0
    %465 = vmatpush1.msra.mxu0 %v26
    %466 = vmatprep.subr.mxu0 0.0
    %467 = vmatpush1.msra.mxu0 %v27
    %468 = vmatprep.subr.mxu0 0.0
    %469 = vmatpush1.msra.mxu0 %v28
    %470 = vmatprep.subr.mxu0 0.0
    %471 = vmatpush1.msra.mxu0 %v29
    %472 = vmatprep.subr.mxu0 0.0
    %473 = vmatpush1.msra.mxu0 %v30
    %474 = vmatprep.subr.mxu0 0.0
    %475 = vmatpush1.msra.mxu0 %v31
    %476 = vmatprep.subr.mxu0 0.0
    %477 = vmatpush1.msra.mxu0 %v32
    %478 = vmatprep.subr.mxu0 0.0
    %479 = vmatpush1.msra.mxu0 %v33
    %480 = vmatprep.subr.mxu0 0.0
    %481 = vmatpush1.msra.mxu0 %v34
    %482 = vmatprep.subr.mxu0 0.0
    %483 = vmatpush1.msra.mxu0 %v35
    %484 = vmatprep.subr.mxu0 0.0
    %485 = vmatpush1.msra.mxu0 %v36
    %486 = vmatprep.subr.mxu0 0.0
    %487 = vmatpush1.msra.mxu0 %v37
    %488 = vmatprep.subr.mxu0 0.0
    %489 = vmatpush1.msra.mxu0 %v38
    %490 = vmatprep.subr.mxu0 0.0
    %491 = vmatpush1.msra.mxu0 %v39
    %492 = vmatprep.subr.mxu0 0.0
    %493 = vmatpush1.msra.mxu0 %v40
    %494 = vmatprep.subr.mxu0 0.0
    %495 = vmatpush1.msra.mxu0 %v41
    %496 = vmatprep.subr.mxu0 0.0
    %497 = vmatpush1.msra.mxu0 %v42
    %498 = vmatprep.subr.mxu0 0.0
    %499 = vmatpush1.msra.mxu0 %v43
    %500 = vmatprep.subr.mxu0 0.0
    %501 = vmatpush1.msra.mxu0 %v44
    %502 = vmatprep.subr.mxu0 0.0
    %503 = vmatpush1.msra.mxu0 %v45
    %504 = vmatprep.subr.mxu0 0.0
    %505 = vmatpush1.msra.mxu0 %v46
    %506 = vmatprep.mubr.f32.mxu0 %v440
    %507 = vmatmul.mubr.f32.gmra.mrb[0].mxu0 %v438
    %v508 = vpop.f32.mrb[0].mxu0
    %v509 = vadd.f32 0.0, %v508
    %v510 = vpop.f32.mrb[0].mxu0
    %511 = vdwg.mxu0
    %512 = vmatprep.subr.mxu0 0.0
    %513 = vmatpush1.msra.mxu0 %v48
    %514 = vmatprep.subr.mxu0 0.0
    %515 = vmatpush1.msra.mxu0 %v49
    %516 = vmatprep.subr.mxu0 0.0
    %517 = vmatpush1.msra.mxu0 %v50
    %518 = vmatprep.subr.mxu0 0.0
    %519 = vmatpush1.msra.mxu0 %v51
    %520 = vmatprep.subr.mxu0 0.0
    %521 = vmatpush1.msra.mxu0 %v52
    %522 = vmatprep.subr.mxu0 0.0
    %523 = vmatpush1.msra.mxu0 %v53
    %524 = vmatprep.subr.mxu0 0.0
    %525 = vmatpush1.msra.mxu0 %v54
    %526 = vmatprep.subr.mxu0 0.0
    %527 = vmatpush1.msra.mxu0 %v55
    %528 = vmatprep.subr.mxu0 0.0
    %529 = vmatpush1.msra.mxu0 %v56
    %530 = vmatprep.subr.mxu0 0.0
    %531 = vmatpush1.msra.mxu0 %v57
    %532 = vmatprep.subr.mxu0 0.0
    %533 = vmatpush1.msra.mxu0 %v58
    %534 = vmatprep.subr.mxu0 0.0
    %535 = vmatpush1.msra.mxu0 %v59
    %536 = vmatprep.subr.mxu0 0.0
    %537 = vmatpush1.msra.mxu0 %v60
    %538 = vmatprep.subr.mxu0 0.0
    %539 = vmatpush1.msra.mxu0 %v61
    %540 = vmatprep.subr.mxu0 0.0
    %541 = vmatpush1.msra.mxu0 %v62
    %542 = vmatprep.subr.mxu0 0.0
    %543 = vmatpush1.msra.mxu0 %v63
    %544 = vmatprep.subr.mxu0 0.0
    %545 = vmatpush1.msra.mxu0 %v64
    %546 = vmatprep.subr.mxu0 0.0
    %547 = vmatpush1.msra.mxu0 %v65
    %548 = vmatprep.subr.mxu0 0.0
    %549 = vmatpush1.msra.mxu0 %v66
    %550 = vmatprep.subr.mxu0 0.0
    %551 = vmatpush1.msra.mxu0 %v67
    %552 = vmatprep.subr.mxu0 0.0
    %553 = vmatpush1.msra.mxu0 %v68
    %554 = vmatprep.subr.mxu0 0.0
    %555 = vmatpush1.msra.mxu0 %v69
    %556 = vmatprep.subr.mxu0 0.0
    %557 = vmatpush1.msra.mxu0 %v70
    %558 = vmatprep.subr.mxu0 0.0
    %559 = vmatpush1.msra.mxu0 %v71
    %560 = vmatprep.subr.mxu0 0.0
    %561 = vmatpush1.msra.mxu0 %v72
    %562 = vmatprep.subr.mxu0 0.0
    %563 = vmatpush1.msra.mxu0 %v73
    %564 = vmatprep.subr.mxu0 0.0
    %565 = vmatpush1.msra.mxu0 %v74
    %566 = vmatprep.subr.mxu0 0.0
    %567 = vmatpush1.msra.mxu0 %v75
    %568 = vmatprep.subr.mxu0 0.0
    %569 = vmatpush1.msra.mxu0 %v76
    %570 = vmatprep.subr.mxu0 0.0
    %571 = vmatpush1.msra.mxu0 %v77
    %572 = vmatprep.subr.mxu0 0.0
    %573 = vmatpush1.msra.mxu0 %v78
    %574 = vmatprep.subr.mxu0 0.0
    %575 = vmatpush1.msra.mxu0 %v79
    %576 = vmatprep.mubr.f32.mxu0 %v440
    %577 = vmatmul.mubr.f32.gmra.mrb[0].mxu0 %v438
    %v578 = vpop.f32.mrb[0].mxu0
    %v579 = vadd.f32 0.0, %v578
    %v580 = vpop.f32.mrb[0].mxu0
    %581 = vdwg.mxu0
    %582 = vmatprep.subr.mxu0 0.0
    %583 = vmatpush1.msra.mxu0 %v81
    %584 = vmatprep.subr.mxu0 0.0
    %585 = vmatpush1.msra.mxu0 %v82
    %586 = vmatprep.subr.mxu0 0.0
    %587 = vmatpush1.msra.mxu0 %v83
    %588 = vmatprep.subr.mxu0 0.0
    %589 = vmatpush1.msra.mxu0 %v84
    %590 = vmatprep.subr.mxu0 0.0
    %591 = vmatpush1.msra.mxu0 %v85
    %592 = vmatprep.subr.mxu0 0.0
    %593 = vmatpush1.msra.mxu0 %v86
    %594 = vmatprep.subr.mxu0 0.0
    %595 = vmatpush1.msra.mxu0 %v87
    %596 = vmatprep.subr.mxu0 0.0
    %597 = vmatpush1.msra.mxu0 %v88
    %598 = vmatprep.subr.mxu0 0.0
    %599 = vmatpush1.msra.mxu0 %v89
    %600 = vmatprep.subr.mxu0 0.0
    %601 = vmatpush1.msra.mxu0 %v90
    %602 = vmatprep.subr.mxu0 0.0
    %603 = vmatpush1.msra.mxu0 %v91
    %604 = vmatprep.subr.mxu0 0.0
    %605 = vmatpush1.msra.mxu0 %v92
    %606 = vmatprep.subr.mxu0 0.0
    %607 = vmatpush1.msra.mxu0 %v93
    %608 = vmatprep.subr.mxu0 0.0
    %609 = vmatpush1.msra.mxu0 %v94
    %610 = vmatprep.subr.mxu0 0.0
    %611 = vmatpush1.msra.mxu0 %v95
    %612 = vmatprep.subr.mxu0 0.0
    %613 = vmatpush1.msra.mxu0 %v96
    %614 = vmatprep.subr.mxu0 0.0
    %615 = vmatpush1.msra.mxu0 %v97
    %616 = vmatprep.subr.mxu0 0.0
    %617 = vmatpush1.msra.mxu0 %v98
    %618 = vmatprep.subr.mxu0 0.0
    %619 = vmatpush1.msra.mxu0 %v99
    %620 = vmatprep.subr.mxu0 0.0
    %621 = vmatpush1.msra.mxu0 %v100
    %622 = vmatprep.subr.mxu0 0.0
    %623 = vmatpush1.msra.mxu0 %v101
    %624 = vmatprep.subr.mxu0 0.0
    %625 = vmatpush1.msra.mxu0 %v102
    %626 = vmatprep.subr.mxu0 0.0
    %627 = vmatpush1.msra.mxu0 %v103
    %628 = vmatprep.subr.mxu0 0.0
    %629 = vmatpush1.msra.mxu0 %v104
    %630 = vmatprep.subr.mxu0 0.0
    %631 = vmatpush1.msra.mxu0 %v105
    %632 = vmatprep.subr.mxu0 0.0
    %633 = vmatpush1.msra.mxu0 %v106
    %634 = vmatprep.subr.mxu0 0.0
    %635 = vmatpush1.msra.mxu0 %v107
    %636 = vmatprep.subr.mxu0 0.0
    %637 = vmatpush1.msra.mxu0 %v108
    %638 = vmatprep.subr.mxu0 0.0
    %639 = vmatpush1.msra.mxu0 %v109
    %640 = vmatprep.subr.mxu0 0.0
    %641 = vmatpush1.msra.mxu0 %v110
    %642 = vmatprep.subr.mxu0 0.0
    %643 = vmatpush1.msra.mxu0 %v111
    %644 = vmatprep.subr.mxu0 0.0
    %645 = vmatpush1.msra.mxu0 %v112
    %646 = vmatprep.mubr.f32.mxu0 %v440
    %647 = vmatmul.mubr.f32.gmra.mrb[0].mxu0 %v438
    %v648 = vpop.f32.mrb[0].mxu0
    %v649 = vadd.f32 0.0, %v648
    %v650 = vpop.f32.mrb[0].mxu0
    %651 = vdwg.mxu0
    %652 = vmatprep.subr.mxu0 0.0
    %653 = vmatpush1.msra.mxu0 %v114
    %654 = vmatprep.subr.mxu0 0.0
    %655 = vmatpush1.msra.mxu0 %v115
    %656 = vmatprep.subr.mxu0 0.0
    %657 = vmatpush1.msra.mxu0 %v116
    %658 = vmatprep.subr.mxu0 0.0
    %659 = vmatpush1.msra.mxu0 %v117
    %660 = vmatprep.subr.mxu0 0.0
    %661 = vmatpush1.msra.mxu0 %v118
    %662 = vmatprep.subr.mxu0 0.0
    %663 = vmatpush1.msra.mxu0 %v119
    %664 = vmatprep.subr.mxu0 0.0
    %665 = vmatpush1.msra.mxu0 %v120
    %666 = vmatprep.subr.mxu0 0.0
    %667 = vmatpush1.msra.mxu0 %v121
    %668 = vmatprep.subr.mxu0 0.0
    %669 = vmatpush1.msra.mxu0 %v122
    %670 = vmatprep.subr.mxu0 0.0
    %671 = vmatpush1.msra.mxu0 %v123
    %672 = vmatprep.subr.mxu0 0.0
    %673 = vmatpush1.msra.mxu0 %v124
    %674 = vmatprep.subr.mxu0 0.0
    %675 = vmatpush1.msra.mxu0 %v125
    %676 = vmatprep.subr.mxu0 0.0
    %677 = vmatpush1.msra.mxu0 %v126
    %678 = vmatprep.subr.mxu0 0.0
    %679 = vmatpush1.msra.mxu0 %v127
    %680 = vmatprep.subr.mxu0 0.0
    %681 = vmatpush1.msra.mxu0 %v128
    %682 = vmatprep.subr.mxu0 0.0
    %683 = vmatpush1.msra.mxu0 %v129
    %684 = vmatprep.subr.mxu0 0.0
    %685 = vmatpush1.msra.mxu0 %v130
    %686 = vmatprep.subr.mxu0 0.0
    %687 = vmatpush1.msra.mxu0 %v131
    %688 = vmatprep.subr.mxu0 0.0
    %689 = vmatpush1.msra.mxu0 %v132
    %690 = vmatprep.subr.mxu0 0.0
    %691 = vmatpush1.msra.mxu0 %v133
    %692 = vmatprep.subr.mxu0 0.0
    %693 = vmatpush1.msra.mxu0 %v134
    %694 = vmatprep.subr.mxu0 0.0
    %695 = vmatpush1.msra.mxu0 %v135
    %696 = vmatprep.subr.mxu0 0.0
    %697 = vmatpush1.msra.mxu0 %v136
    %698 = vmatprep.subr.mxu0 0.0
    %699 = vmatpush1.msra.mxu0 %v137
    %700 = vmatprep.subr.mxu0 0.0
    %701 = vmatpush1.msra.mxu0 %v138
    %702 = vmatprep.subr.mxu0 0.0
    %703 = vmatpush1.msra.mxu0 %v139
    %704 = vmatprep.subr.mxu0 0.0
    %705 = vmatpush1.msra.mxu0 %v140
    %706 = vmatprep.subr.mxu0 0.0
    %707 = vmatpush1.msra.mxu0 %v141
    %708 = vmatprep.subr.mxu0 0.0
    %709 = vmatpush1.msra.mxu0 %v142
    %710 = vmatprep.subr.mxu0 0.0
    %711 = vmatpush1.msra.mxu0 %v143
    %712 = vmatprep.subr.mxu0 0.0
    %713 = vmatpush1.msra.mxu0 %v144
    %714 = vmatprep.subr.mxu0 0.0
    %715 = vmatpush1.msra.mxu0 %v145
    %716 = vmatprep.mubr.f32.mxu0 %v440
    %717 = vmatmul.mubr.f32.gmra.mrb[0].mxu0 %v438
    %v718 = vpop.f32.mrb[0].mxu0
    %v719 = vadd.f32 0.0, %v718
    %v720 = vpop.f32.mrb[0].mxu0
    %721 = vdwg.mxu0
    %s722 = scalar_lea.vmem [#allocation2], 4
    %723 = vst.msk [vmem:[%s722] sm:$0xf] %vm430, %v509
    %s724 = scalar_lea.vmem [#allocation4], 12
    %725 = vst.msk [vmem:[%s724] sm:$0xf] %vm430, %v579
    %s726 = scalar_lea.vmem [#allocation4], 16
    %727 = vst.msk [vmem:[%s726] sm:$0xf] %vm430, %v649
    %s728 = scalar_lea.vmem [#allocation4], 20
    %729 = vst.msk [vmem:[%s728] sm:$0xf] %vm430, %v719
    // Predicated region
    $region10: #{tpu_custom_call.1} parent=1 // pred_check
      _
    $region11: #{tpu_custom_call.1} parent=1 // pred_check_branch
      %731 = sbr.rel (0) target = $region13
    $region12: #{tpu_custom_call.1} parent=1 // pred_region
      %s733 = ssub.s32 128, 128
      %734 = vsyncadd [#allocation3], %s733
      %s735 = sshll.u32 [#allocation2], 4
      %s736 = int_to_ptr.vmem [resolvable:$true] %s735
      %741 = dma.vmem_to_hbm [thread:$0]  %s736, 128, %s2, [#allocation3], 64, 64, 4
    $region13: #{tpu_custom_call.1} parent=1 // pred_fallthru
      _
    // Predicated region
    $region14: #{tpu_custom_call.1} parent=1 // pred_check
      _
    $region15: #{tpu_custom_call.1} parent=1 // pred_check_branch
      %743 = sbr.rel (0) target = $region17
    $region16: #{tpu_custom_call.1} parent=1 // pred_region
      %s745 = ssub.s32 384, 384
      %746 = vsyncadd [#allocation5], %s745
      %s747 = sshll.u32 [#allocation4], 4
      %s748 = int_to_ptr.vmem [resolvable:$true] %s747
      %753 = dma.vmem_to_hbm [thread:$0]  %s748, 384, %s3, [#allocation5], 64, 64, 4
    $region17: #{tpu_custom_call.1} parent=1 // pred_fallthru
      _
    // Predicated region
    $region18: #{tpu_custom_call.1} parent=1 // pred_check
      _
    $region19: #{tpu_custom_call.1} parent=1 // pred_check_branch
      %755 = sbr.rel (0) target = $region21
    $region20: #{tpu_custom_call.1} parent=1 // pred_region
      %756 = dma.done [#allocation3], 128
    $region21: #{tpu_custom_call.1} parent=1 // pred_fallthru
      _
    // Predicated region
    $region22: #{tpu_custom_call.1} parent=1 // pred_check
      _
    $region23: #{tpu_custom_call.1} parent=1 // pred_check_branch
      %758 = sbr.rel (0) target = $region25
    $region24: #{tpu_custom_call.1} parent=1 // pred_region
      %759 = dma.done [#allocation5], 384
    $region25: #{tpu_custom_call.1} parent=1 // pred_fallthru
      _
    %760 = vsyncpa [#allocation3], 1
    %761 = vsyncpa [#allocation5], 1

</llo_original>
